<compile_context>
chip_gen: v7x
topology: tpu7x:2x2x1
jax: 0.10.0
libtpu: 0.0.40
codegen_flags: <defaults>
</compile_context>

<pallas_src>
import functools

import jax
import jax.numpy as jnp
from jax.experimental import pallas as pl
from jax.experimental.pallas import tpu as pltpu

_LANE = 128
_TARGET_BLOCK_BYTES = 4 * 1024 * 1024   # ~4 MiB input block (HBM-streaming sweet spot)
_VMEM_LIMIT_BYTES = 32 * 1024 * 1024    # in+out, double-buffered 4 MiB blocks = 16 MiB < 32 MiB
_TINY_BYPASS_BYTES = 4 * 1024           # below this, a fused XLA clamp beats kernel overhead


def _sublane_multiple(dtype):
    """Minimum sublane tiling for the dtype (f32: 8, bf16: 16, int8/fp8: 32)."""
    itemsize = jnp.dtype(dtype).itemsize
    if itemsize >= 4:
        return 8
    if itemsize == 2:
        return 16
    return 32


def _round_up(a, b):
    return -(-a // b) * b


def _clamp_like_torch(x, min_value, max_value):
    """Exactly torch's two-where formulation: min-clamp applied after max-clamp."""
    lo = jnp.asarray(min_value).astype(x.dtype)
    hi = jnp.asarray(max_value).astype(x.dtype)
    return jnp.maximum(jnp.minimum(x, hi), lo)


def _binary_kernel(x_ref, o_ref, *, min_value, max_value):
    o_ref[...] = _clamp_like_torch(x_ref[...], min_value, max_value)


def _pick_lanes(n):
    """Widest lane-dense last dim (multiple of 128) that divides n."""
    for lanes in (512, 256, _LANE):
        if n % lanes == 0:
            return lanes
    return _LANE  # caller guarantees n % 128 == 0


def _binary_2d(x2d, min_value, max_value):
    rows, lanes = x2d.shape
    dtype = x2d.dtype
    itemsize = jnp.dtype(dtype).itemsize
    sub = _sublane_multiple(dtype)
    n = rows * lanes

    if rows <= sub:
        tile_rows = rows  # full leading dim; single step
    else:
        # Byte-budget block sizing (dtype-aware), aligned to sublane tiling.
        budget_rows = max(sub, (_TARGET_BLOCK_BYTES // (lanes * itemsize)) // sub * sub)
        # Keep >=2 grid steps when the array allows it, so v7x's two TensorCores
        # can both stream (neutral on single-TC v5e/v6e).
        half_rows = max(sub, _round_up(-(-rows // 2), sub))
        tile_rows = min(budget_rows, half_rows, _round_up(rows, sub))

    grid = (pl.cdiv(rows, tile_rows),)
    kernel = functools.partial(
        _binary_kernel, min_value=min_value, max_value=max_value
    )

    return pl.pallas_call(
        kernel,
        out_shape=jax.ShapeDtypeStruct((rows, lanes), dtype),
        grid_spec=pltpu.PrefetchScalarGridSpec(
            num_scalar_prefetch=0,
            grid=grid,
            in_specs=[pl.BlockSpec((tile_rows, lanes), lambda i: (i, 0))],
            out_specs=pl.BlockSpec((tile_rows, lanes), lambda i: (i, 0)),
        ),
        compiler_params=pltpu.CompilerParams(
            dimension_semantics=("parallel",),
            vmem_limit_bytes=_VMEM_LIMIT_BYTES,
        ),
        cost_estimate=pl.CostEstimate(
            flops=2 * n,
            transcendentals=0,
            bytes_accessed=2 * n * itemsize,
        ),
    )(x2d)


def binary_forward(x, min_value=-1.0, max_value=1.0):
    """Clamp x to [min_value, max_value] with a Pallas TPU kernel."""
    orig_shape = x.shape
    n = x.size
    itemsize = jnp.dtype(x.dtype).itemsize
    min_value = float(min_value)
    max_value = float(max_value)

    # Tiny tensors: per-call + per-step overhead dominates; fused XLA clamp wins.
    if n == 0 or n * itemsize <= _TINY_BYPASS_BYTES:
        return _clamp_like_torch(x, min_value, max_value)

    flat = x.reshape(-1)  # free for contiguous layouts
    n_tail = n % _LANE
    n_main = n - n_tail

    if n_tail == 0:
        lanes = _pick_lanes(n)
        out2d = _binary_2d(flat.reshape(n // lanes, lanes), min_value, max_value)
        return out2d.reshape(orig_shape)

    # Ragged case: kernel on the 128-aligned prefix, tiny (<128 elem) tail in XLA.
    # Avoids full-tensor jnp.pad + slice round trips.
    lanes = _pick_lanes(n_main)
    main = _binary_2d(
        flat[:n_main].reshape(n_main // lanes, lanes), min_value, max_value
    ).reshape(-1)
    tail = _clamp_like_torch(flat[n_main:], min_value, max_value)
    return jnp.concatenate([main, tail]).reshape(orig_shape)


def _reference(x, min_value, max_value):
    # Plain-JAX transcription of the torch module.
    r = jnp.where(x > max_value, jnp.asarray(max_value).astype(x.dtype), x)
    r = jnp.where(r < min_value, jnp.asarray(min_value).astype(x.dtype), r)
    return r


if __name__ == "__main__":
    key = jax.random.PRNGKey(0)
    min_value, max_value = -1.0, 1.0

    cases = [
        # (shape, dtype) — scaled by 2 so a meaningful fraction gets clamped.
        ((2, 4, 16, 16), jnp.float32),   # primary NCHW case, 128-aligned, single step
        ((4, 8, 32, 32), jnp.float32),   # multi-step grid (exercises "parallel" axis)
        ((2, 8, 16, 16), jnp.bfloat16),  # narrow dtype path
        ((3, 5, 7, 11), jnp.float32),    # ragged size: aligned prefix + XLA tail
    ]

    for shape, dtype in cases:
        key, sub = jax.random.split(key)
        x = (jax.random.normal(sub, shape, dtype=jnp.float32) * 2.0).astype(dtype)

        out = jax.block_until_ready(binary_forward(x, min_value, max_value))
        ref = _reference(x, min_value, max_value)

        assert out.shape == x.shape, (out.shape, x.shape)
        assert out.dtype == x.dtype, (out.dtype, x.dtype)
        assert jnp.array_equal(out, ref), f"mismatch for shape={shape} dtype={dtype}"

    print("KERNEL_OK")
</pallas_src>

<mosaic_0001>
module attributes {stable_mosaic.version = 11 : i64} {
  func.func @_binary_kernel(%arg0: i32, %arg1: memref<4x512xf32, #tpu.memory_space<vmem>>, %arg2: memref<4x512xf32, #tpu.memory_space<vmem>>) attributes {dimension_semantics = [#tpu.dimension_semantics<parallel>], iteration_bounds = array<i64: 1>, scalar_prefetch = 0 : i64, scratch_operands = 0 : i64, tpu.core_type = #tpu.core_type<tc>, window_params = [{transform_indices = @transform_0, window_bounds = array<i64: 4, 512>}, {transform_indices = @transform_1, window_bounds = array<i64: 4, 512>}]} {
    %c0 = arith.constant 0 : index
    %c0_0 = arith.constant 0 : index
    %0 = vector.load %arg1[%c0, %c0_0] : memref<4x512xf32, #tpu.memory_space<vmem>>, vector<4x512xf32>
    %cst = arith.constant 1.000000e+00 : f32
    %1 = vector.broadcast %cst : f32 to vector<4x512xf32>
    %2 = arith.minimumf %0, %1 : vector<4x512xf32>
    %cst_1 = arith.constant -1.000000e+00 : f32
    %3 = vector.broadcast %cst_1 : f32 to vector<4x512xf32>
    %4 = arith.maximumf %2, %3 : vector<4x512xf32>
    %c0_2 = arith.constant 0 : index
    %c0_3 = arith.constant 0 : index
    %5 = vector.load %arg2[%c0_2, %c0_3] : memref<4x512xf32, #tpu.memory_space<vmem>>, vector<4x512xf32>
    tpu.vector_store %arg2[%c0_2, %c0_3], %4 {strides = array<i32>} : memref<4x512xf32, #tpu.memory_space<vmem>>, vector<4x512xf32>,
    return
  }
  func.func @transform_0(%arg0: i32) -> (i32, i32) {
    %c0_i32 = arith.constant 0 : i32
    %c0_i32_0 = arith.constant 0 : i32
    return %arg0, %c0_i32 : i32, i32
  }
  func.func @transform_1(%arg0: i32) -> (i32, i32) {
    %c0_i32 = arith.constant 0 : i32
    %c0_i32_0 = arith.constant 0 : i32
    return %arg0, %c0_i32 : i32, i32
  }
}

</mosaic_0001>

<llo_original>
// kernel: tpu_custom_call.1
$region0: #{tpu_custom_call.1}
  #allocation0 [shape = 'u32[]', space=smem, size = 0x4, offset = 0x4, fixed_abs, tag = 'smem constant byte address 0x4 - core index']
  #allocation1 [shape = 'u32[144,128]{1,0:T(1,128)}', space=vmem, size = 0x12000, scoped, tag = 'internal scratch']
  %s0 = inlined_call_operand.hbm [shape: f32[4,512], index: 0, kind: input, shape index: {}]
  %s1 = inlined_call_operand.hbm [shape: f32[4,512], index: 1, kind: output, shape index: {}]
  %s2 = sld [smem:[#allocation0]]
  $region18: #{tpu_custom_call.1} parent=0
    _
  %s4 = ssub.s32 1, %s2
  %s5 = scalar_select 0, %s4, %s2
  $region1: #{tpu_custom_call.1} parent=0
    #allocation2 [shape = 'u8[8192]{0}', space=vmem, size = 0x2000, scoped, tag = 'input window, operand 0, single buffered']
    #allocation3 [shape = 's32[1]{0}', space=sflag, size = 0x4, scoped, tag = 'scoped memory for tpu_custom_call.1']
    #allocation4 [shape = 's32[1]{0}', space=sflag, size = 0x4, scoped, tag = 'scoped memory for tpu_custom_call.1']
    #allocation5 [shape = 'u8[8192]{0}', space=vmem, size = 0x2000, scoped, tag = 'output window, operand 0, single buffered']
    %6 = vsyncpa [#allocation3], 0
    %7 = vsyncpa [#allocation4], 0
    // Predicated region
    $region2: #{tpu_custom_call.1} parent=1 // pred_check
      _
    $region3: #{tpu_custom_call.1} parent=1 // pred_check_branch
      %9 = sbr.rel (0) target = $region5
    $region4: #{tpu_custom_call.1} parent=1 // pred_region
      %s11 = ssub.s32 256, 256
      %12 = vsyncadd [#allocation3], %s11
      %s14 = sshll.u32 [#allocation2], 4
      %s15 = int_to_ptr.vmem [resolvable:$true] %s14
      %17 = dma.hbm_to_vmem [thread:$0]  %s0, 256, %s15, [#allocation3]
    $region5: #{tpu_custom_call.1} parent=1 // pred_fallthru
      _
    // Predicated region
    $region6: #{tpu_custom_call.1} parent=1 // pred_check
      _
    $region7: #{tpu_custom_call.1} parent=1 // pred_check_branch
      %19 = sbr.rel (0) target = $region9
    $region8: #{tpu_custom_call.1} parent=1 // pred_region
      %20 = dma.done [#allocation3], 256
    $region9: #{tpu_custom_call.1} parent=1 // pred_fallthru
      _
    %v21 = vld [vmem:[#allocation2] sm:$0xff]
    %v22 = vld [vmem:[#allocation2 + $0x8] sm:$0xff]
    %v23 = vmin.f32 %v21, 1.0
    %v24 = vmin.f32 %v22, 1.0
    %v25 = vmax.f32 %v23, -1.0
    %v26 = vmax.f32 %v24, -1.0
    %27 = vst [vmem:[#allocation5] sm:$0xff] %v25
    %28 = vst [vmem:[#allocation5 + $0x8] sm:$0xff] %v26
    // Predicated region
    $region10: #{tpu_custom_call.1} parent=1 // pred_check
      _
    $region11: #{tpu_custom_call.1} parent=1 // pred_check_branch
      %30 = sbr.rel (0) target = $region13
    $region12: #{tpu_custom_call.1} parent=1 // pred_region
      %s32 = ssub.s32 256, 256
      %33 = vsyncadd [#allocation4], %s32
      %s35 = sshll.u32 [#allocation5], 4
      %s36 = int_to_ptr.vmem [resolvable:$true] %s35
      %38 = dma.vmem_to_hbm [thread:$0]  %s36, 256, %s1, [#allocation4]
    $region13: #{tpu_custom_call.1} parent=1 // pred_fallthru
      _
    // Predicated region
    $region14: #{tpu_custom_call.1} parent=1 // pred_check
      _
    $region15: #{tpu_custom_call.1} parent=1 // pred_check_branch
      %40 = sbr.rel (0) target = $region17
    $region16: #{tpu_custom_call.1} parent=1 // pred_region
      %41 = dma.done [#allocation4], 256
    $region17: #{tpu_custom_call.1} parent=1 // pred_fallthru
      _
    %42 = vsyncpa [#allocation3], 1
    %43 = vsyncpa [#allocation4], 1

</llo_original>
